<compile_context>
chip_gen: v6e
topology: v6e:2x2x1
jax: 0.10.0
libtpu: 0.0.40
codegen_flags: <defaults>
</compile_context>

<pallas_src>
import jax
import jax.numpy as jnp
from jax import lax
from jax.experimental import pallas as pl
from jax.experimental.pallas import tpu as pltpu

# ----------------------------- configuration -----------------------------
B = 2
CIN = 8                      # in_channels
CH = 8                       # channels
RADIX = 2
CARD = 1                     # cardinality (groups)
KH = KW = 3
PAD = 1
H = W = 16
HW = H * W
COUT = CH * RADIX            # conv output channels = channels * radix
G = CARD * RADIX             # conv groups = groups * radix
CIG = CIN // G               # in-channels per conv group
COG = COUT // G              # out-channels per conv group
INTER = max(CIN * RADIX // 4, 32)   # inter_channels
EPS = 1e-5
NTAPS = KH * KW
KDIM = NTAPS * CIN           # folded contraction dim = 72

# TODO(synk): radix == 1 (sigmoid) branch of the PyTorch forward is not
# implemented; this configuration uses radix=2 (softmax path), like ResNeSt.
# DropBlock2D is training-only and dropblock_prob=0.0, so it is identity here.


# ------------------------------ Pallas kernel -----------------------------
def splat_kernel(x_ref, wc_ref, wfc_ref, vp_ref, o_ref):
    """Fused SplAtConv2d forward for one batch element (channel-major).

    x_ref  : (1, KDIM, HW) bf16   im2col input, K index = tap*CIN + cin
    wc_ref : (COUT, KDIM)  bf16   block-diag grouped conv weight, BN0 scale folded
    wfc_ref: (INTER+COUT, INTER)  rows [0:INTER, 0:CH]      = fc1^T (BN1 scale folded)
                                  rows [INTER:INTER+COUT,:] = fc2^T
    vp_ref : (COUT+INTER+COUT, 1) rows [0:COUT]   = conv-bias + BN0 shift (t0)
                                  rows [COUT:+IN] = fc1-bias + BN1 shift (t1)
                                  rows [.. :    ] = fc2 bias (b2)
    o_ref  : (1, CH, HW) f32      output, already NCHW-flattened
    """
    # --- grouped 3x3 conv as ONE K=72 matmul (MXU, bf16 in / f32 acc) ---
    y = jnp.dot(wc_ref[...], x_ref[0],
                preferred_element_type=jnp.float32)              # (COUT, HW)

    # --- folded conv-bias + BN0 shift + ReLU (scale already in weights) ---
    t0 = vp_ref[0:COUT, :]                                       # (COUT, 1)
    y = jnp.maximum(y + t0, 0.0)                                 # (COUT, HW)

    # --- radix split and sum (channels on sublanes) ---
    splits = [y[r * CH:(r + 1) * CH, :] for r in range(RADIX)]   # (CH, HW) each
    gap_sp = splits[0]
    for r in range(1, RADIX):
        gap_sp = gap_sp + splits[r]

    # --- fc1 before the pool (linear => commutes with the mean), then pool ---
    w1t = wfc_ref[0:INTER, 0:CH]                                 # (INTER, CH)
    h1_full = jnp.dot(w1t, gap_sp,
                      preferred_element_type=jnp.float32)        # (INTER, HW)
    t1 = vp_ref[COUT:COUT + INTER, :]                            # (INTER, 1)
    h1 = jnp.maximum(
        jnp.sum(h1_full, axis=1, keepdims=True) * (1.0 / HW) + t1, 0.0)  # (INTER,1)

    # --- fc2 on a lane-broadcast of h1 (keeps shapes lane-dense) ---
    w2t = wfc_ref[INTER:INTER + COUT, 0:INTER]                   # (COUT, INTER)
    b2 = vp_ref[COUT + INTER:COUT + INTER + COUT, :]             # (COUT, 1)
    logits = jnp.dot(w2t, jnp.broadcast_to(h1, (INTER, HW)),
                     preferred_element_type=jnp.float32) + b2    # (COUT, HW)

    # --- softmax over the radix axis (radix > 1 path) ---
    lr = [logits[r * CH:(r + 1) * CH, :] for r in range(RADIX)]  # (CH, HW) each
    m = lr[0]
    for r in range(1, RADIX):
        m = jnp.maximum(m, lr[r])
    er = [jnp.exp(l - m) for l in lr]
    den = er[0]
    for r in range(1, RADIX):
        den = den + er[r]
    inv = pl.reciprocal(den, approx=True)                        # EUP slot

    # --- attention-weighted sum of radix splits ---
    out = (er[0] * inv) * splits[0]
    for r in range(1, RADIX):
        out = out + (er[r] * inv) * splits[r]                    # (CH, HW)
    o_ref[0] = out


# ------------------------------ JAX wrapper -------------------------------
def splat_conv2d(x_nchw, params):
    (w_hwio, conv_b, g0, b0, m0, v0, w1, b1, g1, be1, m1, v1, w2, b2) = params

    # Fold BatchNorm (eval mode) + conv/fc1 biases into scale/shift.
    s0 = g0 / jnp.sqrt(v0 + EPS)                       # (COUT,)
    t0 = conv_b * s0 + (b0 - m0 * s0)
    s1 = g1 / jnp.sqrt(v1 + EPS)                       # (INTER,)
    t1 = b1 * s1 + (be1 - m1 * s1)

    # Expand grouped conv weight to block-diagonal and flatten the tap axis
    # into the contraction: (COUT, KH*KW*CIN), row order tap*CIN + cin.
    w_exp = jnp.zeros((KH, KW, CIN, COUT), jnp.float32)
    for g in range(G):
        w_exp = w_exp.at[:, :, g * CIG:(g + 1) * CIG,
                         g * COG:(g + 1) * COG].set(
            w_hwio[:, :, :, g * COG:(g + 1) * COG])
    wc = w_exp.reshape(KDIM, COUT).T                   # (COUT, KDIM)
    wc = (wc * s0[:, None]).astype(jnp.bfloat16)       # fold BN0 scale, bf16 MXU

    # Pack fc1/fc2 weights (BN1 scale folded into fc1) into one block.
    w1t = (w1 * s1[None, :]).T                         # (INTER, CH)
    w2t = w2.T                                         # (COUT, INTER)
    wfc = jnp.zeros((INTER + COUT, INTER), jnp.float32)
    wfc = wfc.at[0:INTER, 0:CH].set(w1t)
    wfc = wfc.at[INTER:INTER + COUT, 0:INTER].set(w2t)

    # Pack the small shift/bias vectors into a single column block.
    vparams = jnp.concatenate([t0, t1, b2]).reshape(COUT + INTER + COUT, 1)

    # Channel-major im2col: NCHW is already the right layout (no transpose);
    # pad spatially and stack the 9 taps along the contraction axis.
    x_bf = x_nchw.astype(jnp.bfloat16)
    xp = jnp.pad(x_bf, ((0, 0), (0, 0), (PAD, PAD), (PAD, PAD)))
    taps = [xp[:, :, kh:kh + H, kw:kw + W].reshape(B, CIN, HW)
            for kh in range(KH) for kw in range(KW)]
    x_taps = jnp.stack(taps, axis=1).reshape(B, KDIM, HW)        # (B, 72, 256)

    out_flat = pl.pallas_call(
        splat_kernel,
        out_shape=jax.ShapeDtypeStruct((B, CH, HW), jnp.float32),
        grid_spec=pltpu.PrefetchScalarGridSpec(
            num_scalar_prefetch=0,
            grid=(B,),
            in_specs=[
                pl.BlockSpec((1, KDIM, HW), lambda b: (b, 0, 0)),
                pl.BlockSpec((COUT, KDIM), lambda b: (0, 0)),
                pl.BlockSpec((INTER + COUT, INTER), lambda b: (0, 0)),
                pl.BlockSpec((COUT + INTER + COUT, 1), lambda b: (0, 0)),
            ],
            out_specs=pl.BlockSpec((1, CH, HW), lambda b: (b, 0, 0)),
        ),
        compiler_params=pltpu.CompilerParams(
            dimension_semantics=("parallel",)),
    )(x_taps, wc, wfc, vparams)

    # (B, CH, HW) is already NCHW-flat; reshape is free.
    return out_flat.reshape(B, CH, H, W)


# ----------------------- pure-JAX reference (checking) ---------------------
def ref_forward(x_nchw, params):
    (w_hwio, conv_b, g0, b0, m0, v0, w1, b1, g1, be1, m1, v1, w2, b2) = params
    x = jnp.transpose(x_nchw, (0, 2, 3, 1)).astype(jnp.float32)
    y = lax.conv_general_dilated(
        x, w_hwio, (1, 1), ((PAD, PAD), (PAD, PAD)),
        dimension_numbers=('NHWC', 'HWIO', 'NHWC'),
        feature_group_count=G, precision=lax.Precision.HIGHEST)
    y = y + conv_b
    y = (y - m0) * (g0 / jnp.sqrt(v0 + EPS)) + b0
    y = jnp.maximum(y, 0.0)
    y_r = y.reshape(B, H, W, RADIX, CH)
    gap = jnp.mean(jnp.sum(y_r, axis=3), axis=(1, 2))            # (B, CH)
    z1 = jnp.dot(gap, w1, precision=lax.Precision.HIGHEST) + b1
    z1 = (z1 - m1) * (g1 / jnp.sqrt(v1 + EPS)) + be1
    z1 = jnp.maximum(z1, 0.0)
    logits = jnp.dot(z1, w2, precision=lax.Precision.HIGHEST) + b2
    att = jax.nn.softmax(logits.reshape(B, RADIX, CH), axis=1)
    out = jnp.sum(y_r * att[:, None, None, :, :], axis=3)        # (B,H,W,CH)
    return jnp.transpose(out, (0, 3, 1, 2))


# --------------------------------- main ------------------------------------
if __name__ == "__main__":
    key = jax.random.PRNGKey(0)
    ks = jax.random.split(key, 7)
    x = jax.random.normal(ks[0], (B, CIN, H, W), jnp.float32)

    # Deterministic synthetic parameters (shapes follow the module __init__).
    w_hwio = 0.1 * jax.random.normal(ks[1], (KH, KW, CIG, COUT), jnp.float32)
    conv_b = 0.05 * jax.random.normal(ks[2], (COUT,), jnp.float32)
    g0 = 1.0 + 0.05 * jnp.arange(COUT, dtype=jnp.float32)
    b0 = 0.01 * jnp.arange(COUT, dtype=jnp.float32)
    m0 = 0.02 * jnp.arange(COUT, dtype=jnp.float32)
    v0 = 1.0 + 0.03 * jnp.arange(COUT, dtype=jnp.float32)
    w1 = 0.1 * jax.random.normal(ks[3], (CH, INTER), jnp.float32)
    b1 = 0.05 * jax.random.normal(ks[4], (INTER,), jnp.float32)
    g1 = 1.0 + 0.02 * jnp.arange(INTER, dtype=jnp.float32)
    be1 = 0.01 * jnp.arange(INTER, dtype=jnp.float32)
    m1 = 0.015 * jnp.arange(INTER, dtype=jnp.float32)
    v1 = 1.0 + 0.01 * jnp.arange(INTER, dtype=jnp.float32)
    w2 = 0.1 * jax.random.normal(ks[5], (INTER, COUT), jnp.float32)
    b2 = 0.05 * jax.random.normal(ks[6], (COUT,), jnp.float32)
    params = (w_hwio, conv_b, g0, b0, m0, v0,
              w1, b1, g1, be1, m1, v1, w2, b2)

    out = jax.block_until_ready(splat_conv2d(x, params))
    ref = jax.block_until_ready(ref_forward(x, params))

    assert out.shape == (B, CH, H, W), out.shape
    err = float(jnp.max(jnp.abs(out - ref)))
    if err > 2e-2:
        raise AssertionError(f"mismatch vs reference: max abs err {err}")
    print("KERNEL_OK")
</pallas_src>

<mosaic_0001>
module attributes {stable_mosaic.version = 11 : i64} {
  func.func @splat_kernel(%arg0: i32, %arg1: memref<1x72x256xbf16, #tpu.memory_space<vmem>>, %arg2: memref<16x72xbf16, #tpu.memory_space<vmem>>, %arg3: memref<48x32xf32, #tpu.memory_space<vmem>>, %arg4: memref<64x1xf32, #tpu.memory_space<vmem>>, %arg5: memref<1x8x256xf32, #tpu.memory_space<vmem>>) attributes {dimension_semantics = [#tpu.dimension_semantics<parallel>], iteration_bounds = array<i64: 2>, scalar_prefetch = 0 : i64, scratch_operands = 0 : i64, tpu.core_type = #tpu.core_type<tc>, window_params = [{transform_indices = @transform_0, window_bounds = array<i64: 1, 72, 256>}, {pipeline_mode = #tpu.pipeline_mode<synchronous>, transform_indices = @transform_1, window_bounds = array<i64: 16, 72>}, {pipeline_mode = #tpu.pipeline_mode<synchronous>, transform_indices = @transform_2, window_bounds = array<i64: 48, 32>}, {pipeline_mode = #tpu.pipeline_mode<synchronous>, transform_indices = @transform_3, window_bounds = array<i64: 64, 1>}, {transform_indices = @transform_4, window_bounds = array<i64: 1, 8, 256>}]} {
    %c0 = arith.constant 0 : index
    %c0_0 = arith.constant 0 : index
    %0 = vector.load %arg2[%c0, %c0_0] : memref<16x72xbf16, #tpu.memory_space<vmem>>, vector<16x72xbf16>
    %c0_1 = arith.constant 0 : index
    %c0_2 = arith.constant 0 : index
    %c0_3 = arith.constant 0 : index
    %1 = vector.load %arg1[%c0_1, %c0_2, %c0_3] : memref<1x72x256xbf16, #tpu.memory_space<vmem>>, vector<1x72x256xbf16>
    %2 = vector.shape_cast %1 : vector<1x72x256xbf16> to vector<72x256xbf16>
    %cst = arith.constant dense<0.000000e+00> : vector<16x256xf32>
    %3 = tpu.matmul %0, %2, %cst {dimension_numbers = #tpu.dot_dimension_numbers<[1], [0], [0], [1], [0, 0, 1, 1], [], []>} : vector<16x72xbf16>, vector<72x256xbf16>, vector<16x256xf32> -> vector<16x256xf32>
    %c0_4 = arith.constant 0 : index
    %c0_5 = arith.constant 0 : index
    %4 = vector.load %arg4[%c0_4, %c0_5] : memref<64x1xf32, #tpu.memory_space<vmem>>, vector<16x1xf32>
    %5 = vector.broadcast %4 : vector<16x1xf32> to vector<16x256xf32>
    %6 = arith.addf %3, %5 : vector<16x256xf32>
    %cst_6 = arith.constant 0.000000e+00 : f32
    %7 = vector.broadcast %cst_6 : f32 to vector<16x256xf32>
    %8 = arith.maximumf %6, %7 : vector<16x256xf32>
    %9 = vector.extract_strided_slice %8 {offsets = [0, 0], sizes = [8, 256], strides = [1, 1]} : vector<16x256xf32> to vector<8x256xf32>
    %10 = vector.extract_strided_slice %8 {offsets = [8, 0], sizes = [8, 256], strides = [1, 1]} : vector<16x256xf32> to vector<8x256xf32>
    %11 = arith.addf %9, %10 : vector<8x256xf32>
    %c0_7 = arith.constant 0 : index
    %c0_8 = arith.constant 0 : index
    %12 = vector.load %arg3[%c0_7, %c0_8] : memref<48x32xf32, #tpu.memory_space<vmem>>, vector<32x8xf32>
    %cst_9 = arith.constant dense<0.000000e+00> : vector<32x256xf32>
    %13 = tpu.matmul %12, %11, %cst_9 {dimension_numbers = #tpu.dot_dimension_numbers<[1], [0], [0], [1], [0, 0, 1, 1], [], []>} : vector<32x8xf32>, vector<8x256xf32>, vector<32x256xf32> -> vector<32x256xf32>
    %c16 = arith.constant 16 : index
    %c0_10 = arith.constant 0 : index
    %14 = vector.load %arg4[%c16, %c0_10] : memref<64x1xf32, #tpu.memory_space<vmem>>, vector<32x1xf32>
    %cst_11 = arith.constant dense<0.000000e+00> : vector<32xf32>
    %15 = vector.multi_reduction <add>, %13, %cst_11 [1] : vector<32x256xf32> to vector<32xf32>
    %16 = vector.shape_cast %15 : vector<32xf32> to vector<32x1xf32>
    %cst_12 = arith.constant 3.906250e-03 : f32
    %17 = vector.broadcast %cst_12 : f32 to vector<32x1xf32>
    %18 = arith.mulf %16, %17 : vector<32x1xf32>
    %19 = arith.addf %18, %14 : vector<32x1xf32>
    %cst_13 = arith.constant 0.000000e+00 : f32
    %20 = vector.broadcast %cst_13 : f32 to vector<32x1xf32>
    %21 = arith.maximumf %19, %20 : vector<32x1xf32>
    %c32 = arith.constant 32 : index
    %c0_14 = arith.constant 0 : index
    %22 = vector.load %arg3[%c32, %c0_14] : memref<48x32xf32, #tpu.memory_space<vmem>>, vector<16x32xf32>
    %c48 = arith.constant 48 : index
    %c0_15 = arith.constant 0 : index
    %23 = vector.load %arg4[%c48, %c0_15] : memref<64x1xf32, #tpu.memory_space<vmem>>, vector<16x1xf32>
    %24 = vector.shape_cast %21 : vector<32x1xf32> to vector<32x1xf32>
    %25 = vector.broadcast %24 : vector<32x1xf32> to vector<32x256xf32>
    %cst_16 = arith.constant dense<0.000000e+00> : vector<16x256xf32>
    %26 = tpu.matmul %22, %25, %cst_16 {dimension_numbers = #tpu.dot_dimension_numbers<[1], [0], [0], [1], [0, 0, 1, 1], [], []>} : vector<16x32xf32>, vector<32x256xf32>, vector<16x256xf32> -> vector<16x256xf32>
    %27 = vector.broadcast %23 : vector<16x1xf32> to vector<16x256xf32>
    %28 = arith.addf %26, %27 : vector<16x256xf32>
    %29 = vector.extract_strided_slice %28 {offsets = [0, 0], sizes = [8, 256], strides = [1, 1]} : vector<16x256xf32> to vector<8x256xf32>
    %30 = vector.extract_strided_slice %28 {offsets = [8, 0], sizes = [8, 256], strides = [1, 1]} : vector<16x256xf32> to vector<8x256xf32>
    %31 = arith.maximumf %29, %30 : vector<8x256xf32>
    %32 = arith.subf %29, %31 : vector<8x256xf32>
    %33 = math.exp %32 : vector<8x256xf32>
    %34 = arith.subf %30, %31 : vector<8x256xf32>
    %35 = math.exp %34 : vector<8x256xf32>
    %36 = arith.addf %33, %35 : vector<8x256xf32>
    %37 = tpu.reciprocal %36 {approx = true} : vector<8x256xf32> -> vector<8x256xf32>
    %38 = arith.mulf %33, %37 : vector<8x256xf32>
    %39 = arith.mulf %38, %9 : vector<8x256xf32>
    %40 = arith.mulf %35, %37 : vector<8x256xf32>
    %41 = arith.mulf %40, %10 : vector<8x256xf32>
    %42 = arith.addf %39, %41 : vector<8x256xf32>
    %c0_17 = arith.constant 0 : index
    %c0_18 = arith.constant 0 : index
    %c0_19 = arith.constant 0 : index
    %43 = vector.load %arg5[%c0_17, %c0_18, %c0_19] : memref<1x8x256xf32, #tpu.memory_space<vmem>>, vector<1x8x256xf32>
    %44 = vector.shape_cast %43 : vector<1x8x256xf32> to vector<8x256xf32>
    %45 = vector.shape_cast %42 : vector<8x256xf32> to vector<1x8x256xf32>
    tpu.vector_store %arg5[%c0_17, %c0_18, %c0_19], %45 {strides = array<i32>} : memref<1x8x256xf32, #tpu.memory_space<vmem>>, vector<1x8x256xf32>,
    return
  }
  func.func @transform_0(%arg0: i32) -> (i32, i32, i32) {
    %c0_i32 = arith.constant 0 : i32
    %c0_i32_0 = arith.constant 0 : i32
    %c0_i32_1 = arith.constant 0 : i32
    return %arg0, %c0_i32, %c0_i32_0 : i32, i32, i32
  }
  func.func @transform_1(%arg0: i32) -> (i32, i32) {
    %c0_i32 = arith.constant 0 : i32
    %c0_i32_0 = arith.constant 0 : i32
    %c0_i32_1 = arith.constant 0 : i32
    return %c0_i32, %c0_i32_0 : i32, i32
  }
  func.func @transform_2(%arg0: i32) -> (i32, i32) {
    %c0_i32 = arith.constant 0 : i32
    %c0_i32_0 = arith.constant 0 : i32
    %c0_i32_1 = arith.constant 0 : i32
    return %c0_i32, %c0_i32_0 : i32, i32
  }
  func.func @transform_3(%arg0: i32) -> (i32, i32) {
    %c0_i32 = arith.constant 0 : i32
    %c0_i32_0 = arith.constant 0 : i32
    %c0_i32_1 = arith.constant 0 : i32
    return %c0_i32, %c0_i32_0 : i32, i32
  }
  func.func @transform_4(%arg0: i32) -> (i32, i32, i32) {
    %c0_i32 = arith.constant 0 : i32
    %c0_i32_0 = arith.constant 0 : i32
    %c0_i32_1 = arith.constant 0 : i32
    return %arg0, %c0_i32, %c0_i32_0 : i32, i32, i32
  }
}

</mosaic_0001>

<llo_original>
// kernel: tpu_custom_call.1
$region0: #{tpu_custom_call.1}
  #allocation0 [shape = 'u32[]', space=smem, size = 0x4, offset = 0x4, fixed_abs, tag = 'smem constant byte address 0x4 - core index']
  #allocation1 [shape = 'u32[144,128]{1,0:T(1,128)}', space=vmem, size = 0x12000, scoped, tag = 'internal scratch']
  %s0 = inlined_call_operand.vmem [shape: bf16[2,72,256], index: 0, kind: input, shape index: {}]
  %s1 = inlined_call_operand.hbm [shape: bf16[16,72], index: 1, kind: input, shape index: {}]
  %s2 = inlined_call_operand.vmem [shape: f32[48,32], index: 2, kind: input, shape index: {}]
  %s3 = inlined_call_operand.vmem [shape: f32[64,1], index: 3, kind: input, shape index: {}]
  %s4 = inlined_call_operand.hbm [shape: f32[2,8,256], index: 4, kind: output, shape index: {}]
  %s5 = sld [smem:[#allocation0]]
  $region53: #{tpu_custom_call.1} parent=0
    _
  %s7 = ssub.s32 1, %s5
  %s8 = scalar_select 0, %s7, %s5
  $region1: #{tpu_custom_call.1} parent=0
    #allocation2 [shape = 'u8[4096]{0}', space=vmem, size = 0x1000, scoped, tag = 'input window, operand 1, single buffered']
    #allocation3 [shape = 's32[2]{0}', space=sflag, size = 0x8, scoped, tag = 'scoped memory for tpu_custom_call.1']
    #allocation4 [shape = 's32[2]{0}', space=sflag, size = 0x8, scoped, tag = 'scoped memory for tpu_custom_call.1']
    #allocation5 [shape = 'u8[16384]{0}', space=vmem, size = 0x4000, scoped, tag = 'output window, operand 0']
    %9 = vsyncpa [#allocation3], 0
    %10 = vsyncpa [#allocation4], 0
    %s11 = scalar_lea.sflag [#allocation4], 1
    %12 = vsyncpa %s11, 0
    loop: start=0, step=1, limit=4
    $region2: #{tpu_custom_call.1} parent=1 // loop_pre_header
      _
    $region3: #{tpu_custom_call.1} parent=1 // loop_header
      %s14 = sphi 0, %s18
      %p15 = scmp.ge.s32.totalorder %s14, 4
      %s24 = sphi 0, %s26
      %s27 = sphi 0, %s24
      %s28 = sphi 0, %s27
      %s44 = sphi 0, %s28
      %s48 = sphi 0, %s48
      %s50 = sphi 0, %s48
      %s51 = sphi 0, %s50
      %s65 = sphi 0, %s51
      %s69 = sphi 0, %s69
      %s71 = sphi 0, %s69
      %s72 = sphi 0, %s71
      %s86 = sphi 0, %s72
      %s90 = sphi 0, %s90
      %s92 = sphi 0, %s90
      %s93 = sphi 0, %s92
      %s107 = sphi 0, %s93
      %s113 = sphi 0, %s115
      %s116 = sphi 0, %s113
      %s117 = sphi 0, %s116
      %s133 = sphi 0, %s117
    $region4: #{tpu_custom_call.1} parent=1 // loop_header_branch
      %17 = sbr.rel (%p15) target = $region8
    $region5: #{tpu_custom_call.1} parent=1 // loop_body
      %s19 = ssub.s32 %s14, 1
      %s20 = ssub.s32 %s14, 2
      %s21 = sadd.s32 %s14, 1
      %s22 = ssub.s32 %s14, %s21
      %p23 = scmp.eq.s32.totalorder %s22, 0
      %s25 = sadd.s32 %s24, 1
      %s26 = scalar_select %p23, %s24, %s25
      %p29 = pneg %p23
      %p30 = scmp.eq.s32.totalorder %s14, 1
      %p31 = por %p29, %p30
      %p32 = scmp.ne.s32.totalorder %s24, %s27
      %p33 = scmp.eq.s32.totalorder %s14, 0
      %p34 = por %p32, %p33
      %p35 = scmp.ne.s32.totalorder %s24, %s27
      %p36 = scmp.eq.s32.totalorder %s19, 1
      %p37 = por %p35, %p36
      %p38 = scmp.ne.s32.totalorder %s27, %s28
      %p39 = scmp.eq.s32.totalorder %s19, 0
      %p40 = por %p38, %p39
      %p41 = scmp.ne.s32.totalorder %s27, %s28
      %p42 = scmp.eq.s32.totalorder %s20, 1
      %p43 = por %p41, %p42
      %p45 = scmp.ne.s32.totalorder %s28, %s44
      %p46 = scmp.eq.s32.totalorder %s20, 0
      %p47 = por %p45, %p46
      %s49 = sadd.s32 %s48, 1
      %p52 = scmp.eq.s32.totalorder %s14, 1
      %p53 = scmp.ne.s32.totalorder %s48, %s50
      %p54 = scmp.eq.s32.totalorder %s14, 0
      %p55 = por %p53, %p54
      %p56 = scmp.ne.s32.totalorder %s48, %s50
      %p57 = scmp.eq.s32.totalorder %s19, 1
      %p58 = por %p56, %p57
      %p59 = scmp.ne.s32.totalorder %s50, %s51
      %p60 = scmp.eq.s32.totalorder %s19, 0
      %p61 = por %p59, %p60
      %p62 = scmp.ne.s32.totalorder %s50, %s51
      %p63 = scmp.eq.s32.totalorder %s20, 1
      %p64 = por %p62, %p63
      %p66 = scmp.ne.s32.totalorder %s51, %s65
      %p67 = scmp.eq.s32.totalorder %s20, 0
      %p68 = por %p66, %p67
      %s70 = sadd.s32 %s69, 1
      %p73 = scmp.eq.s32.totalorder %s14, 1
      %p74 = scmp.ne.s32.totalorder %s69, %s71
      %p75 = scmp.eq.s32.totalorder %s14, 0
      %p76 = por %p74, %p75
      %p77 = scmp.ne.s32.totalorder %s69, %s71
      %p78 = scmp.eq.s32.totalorder %s19, 1
      %p79 = por %p77, %p78
      %p80 = scmp.ne.s32.totalorder %s71, %s72
      %p81 = scmp.eq.s32.totalorder %s19, 0
      %p82 = por %p80, %p81
      %p83 = scmp.ne.s32.totalorder %s71, %s72
      %p84 = scmp.eq.s32.totalorder %s20, 1
      %p85 = por %p83, %p84
      %p87 = scmp.ne.s32.totalorder %s72, %s86
      %p88 = scmp.eq.s32.totalorder %s20, 0
      %p89 = por %p87, %p88
      %s91 = sadd.s32 %s90, 1
      %p94 = scmp.eq.s32.totalorder %s14, 1
      %p95 = scmp.ne.s32.totalorder %s90, %s92
      %p96 = scmp.eq.s32.totalorder %s14, 0
      %p97 = por %p95, %p96
      %p98 = scmp.ne.s32.totalorder %s90, %s92
      %p99 = scmp.eq.s32.totalorder %s19, 1
      %p100 = por %p98, %p99
      %p101 = scmp.ne.s32.totalorder %s92, %s93
      %p102 = scmp.eq.s32.totalorder %s19, 0
      %p103 = por %p101, %p102
      %p104 = scmp.ne.s32.totalorder %s92, %s93
      %p105 = scmp.eq.s32.totalorder %s20, 1
      %p106 = por %p104, %p105
      %p108 = scmp.ne.s32.totalorder %s93, %s107
      %p109 = scmp.eq.s32.totalorder %s20, 0
      %p110 = por %p108, %p109
      %s111 = ssub.s32 %s14, %s21
      %p112 = scmp.eq.s32.totalorder %s111, 0
      %s114 = sadd.s32 %s113, 1
      %s115 = scalar_select %p112, %s113, %s114
      %p118 = pneg %p112
      %p119 = scmp.eq.s32.totalorder %s14, 1
      %p120 = por %p118, %p119
      %p121 = scmp.ne.s32.totalorder %s113, %s116
      %p122 = scmp.eq.s32.totalorder %s14, 0
      %p123 = por %p121, %p122
      %p124 = scmp.ne.s32.totalorder %s113, %s116
      %p125 = scmp.eq.s32.totalorder %s19, 1
      %p126 = por %p124, %p125
      %p127 = scmp.ne.s32.totalorder %s116, %s117
      %p128 = scmp.eq.s32.totalorder %s19, 0
      %p129 = por %p127, %p128
      %p130 = scmp.ne.s32.totalorder %s116, %s117
      %p131 = scmp.eq.s32.totalorder %s20, 1
      %p132 = por %p130, %p131
      %p134 = scmp.ne.s32.totalorder %s117, %s133
      %p135 = scmp.eq.s32.totalorder %s20, 0
      %p136 = por %p134, %p135
      %p137 = scmp.le.s32.totalorder 1, %s14
      %p138 = scmp.lt.s32.totalorder %s14, 3
      %p139 = pnand %p137, %p138
      %p140 = pneg %p139
      // Predicated region
      $region9: #{tpu_custom_call.1} parent=5 // pred_check
        _
      $region10: #{tpu_custom_call.1} parent=5 // pred_check_branch
        %142 = sbr.rel (%p139) target = $region12
      $region11: #{tpu_custom_call.1} parent=5 // pred_region
        %s143 = ssub.s32 %s14, 1
        // Predicated region
        $region13: #{tpu_custom_call.1} parent=11 // pred_check
          %p144 = pneg %p61
        $region14: #{tpu_custom_call.1} parent=11 // pred_check_branch
          %146 = sbr.rel (%p144) target = $region16
        $region15: #{tpu_custom_call.1} parent=11 // pred_region
          %s148 = ssub.s32 128, 128
          %149 = vsyncadd [#allocation3], %s148
          %s150 = sshll.u32 [#allocation2], 4
          %s151 = int_to_ptr.vmem [resolvable:$true] %s150
          %156 = dma.hbm_to_vmem [thread:$0]  %s1, 128, %s151, [#allocation3], 64, 64, 4
        $region16: #{tpu_custom_call.1} parent=11 // pred_fallthru
          _
        // Predicated region
        $region17: #{tpu_custom_call.1} parent=11 // pred_check
          %p157 = pneg %p82
        $region18: #{tpu_custom_call.1} parent=11 // pred_check_branch
          %159 = sbr.rel (%p157) target = $region20
        $region19: #{tpu_custom_call.1} parent=11 // pred_region
          _
        $region20: #{tpu_custom_call.1} parent=11 // pred_fallthru
          _
        // Predicated region
        $region21: #{tpu_custom_call.1} parent=11 // pred_check
          %p160 = pneg %p103
        $region22: #{tpu_custom_call.1} parent=11 // pred_check_branch
          %162 = sbr.rel (%p160) target = $region24
        $region23: #{tpu_custom_call.1} parent=11 // pred_region
          _
        $region24: #{tpu_custom_call.1} parent=11 // pred_fallthru
          _
      $region12: #{tpu_custom_call.1} parent=5 // pred_fallthru
        _
      %p163 = scmp.lt.s32.totalorder %s14, 2
      // Predicated region
      $region25: #{tpu_custom_call.1} parent=5 // pred_check
        %p164 = pneg %p163
      $region26: #{tpu_custom_call.1} parent=5 // pred_check_branch
        %166 = sbr.rel (%p164) target = $region28
      $region27: #{tpu_custom_call.1} parent=5 // pred_region
        // Predicated region
        $region29: #{tpu_custom_call.1} parent=27 // pred_check
          %p167 = pneg %p34
        $region30: #{tpu_custom_call.1} parent=27 // pred_check_branch
          %169 = sbr.rel (%p167) target = $region32
        $region31: #{tpu_custom_call.1} parent=27 // pred_region
          %p170 = scmp.lt.s32.totalorder %s14, 1
          %s171 = scalar_select %p170, %s14, 1
          %s172 = smul.addr %s171, 18
          %s173 = smul.addr %s172, 4
          %s174 = scalar_lea.vmem %s0, %s173
        $region32: #{tpu_custom_call.1} parent=27 // pred_fallthru
          _
      $region28: #{tpu_custom_call.1} parent=5 // pred_fallthru
        _
      %p175 = scmp.le.s32.totalorder 1, %s14
      %p176 = scmp.lt.s32.totalorder %s14, 3
      %p177 = pnand %p175, %p176
      %p178 = pneg %p177
      // Predicated region
      $region33: #{tpu_custom_call.1} parent=5 // pred_check
        _
      $region34: #{tpu_custom_call.1} parent=5 // pred_check_branch
        %180 = sbr.rel (%p177) target = $region36
      $region35: #{tpu_custom_call.1} parent=5 // pred_region
        %s181 = ssub.s32 %s14, 1
        // Predicated region
        $region37: #{tpu_custom_call.1} parent=35 // pred_check
          %p182 = pneg %p61
        $region38: #{tpu_custom_call.1} parent=35 // pred_check_branch
          %184 = sbr.rel (%p182) target = $region40
        $region39: #{tpu_custom_call.1} parent=35 // pred_region
          %185 = dma.done [#allocation3], 128
        $region40: #{tpu_custom_call.1} parent=35 // pred_fallthru
          _
        %p186 = scmp.lt.s32.totalorder %s19, 1
        %s187 = scalar_select %p186, %s19, 1
        %s188 = smul.addr %s187, 18
        %s189 = smul.addr %s188, 4
        %s190 = scalar_lea.vmem %s0, %s189
        %p191 = pneg %p40
        %p192 = pneg %p37
        %p193 = pneg %p61
        %p194 = pneg %p58
        %p195 = pneg %p82
        %p196 = pneg %p79
        %p197 = pneg %p103
        %p198 = pneg %p100
        %p199 = pneg %p129
        %p200 = pneg %p126
        %s201 = sand.u32 %s116, 1
        %s202 = scalar_lea.sflag [#allocation4], %s201
        %s203 = sand.u32 %s116, 1
        %s204 = smul.addr %s203, 16
        %s205 = scalar_lea.vmem [#allocation5], %s204
        %p206 = scmp.lt.s32.totalorder %s19, 1
        %s207 = scalar_select %p206, %s19, 1
        %s208 = smul.addr %s207, 18
        %s209 = smul.addr %s208, 4
        %s210 = scalar_lea.vmem %s0, %s209
        %v212 = vld [vmem:[#allocation2] sm:$0xf]
        %v213 = vld [vmem:[#allocation2 + $0x4] sm:$0xf]
        %v214 = vld [vmem:[%s210] sm:$0xff]
        %v215 = vld [vmem:[%s210 + $0x8] sm:$0xff]
        %v216 = vld [vmem:[%s210 + $0x10] sm:$0xff]
        %v217 = vld [vmem:[%s210 + $0x18] sm:$0xff]
        %v218 = vld [vmem:[%s210 + $0x20] sm:$0xff]
        %v219 = vld [vmem:[%s210 + $0x28] sm:$0xff]
        %v220 = vld [vmem:[%s210 + $0x30] sm:$0xff]
        %v221 = vld [vmem:[%s210 + $0x38] sm:$0xff]
        %v222 = vld [vmem:[%s210 + $0x40] sm:$0xff]
        %v223 = vld [vmem:[%s3] sm:$0xff]
        %v224 = vld [vmem:[%s3 + $0x8] sm:$0xff]
        %226 = vset.pattern.permute.xlu0 0
        %227 = vperm.xlu0 %226, %v223
        %v228 = vpop.permute.xlu0 %227
        %231 = vset.pattern.permute.xlu0 0
        %232 = vperm.xlu0 %231, %v224
        %v233 = vpop.permute.xlu0 %232
        %v237 = vunpack.c.l.b16 %v212
        %v238 = vunpack.c.l.b16 %v213
        %v239 = vpack.c.b16 %v238, %v237
        %v249 = vunpack.c.l.b16 %v214
        %v250 = vunpack.c.h.b16 %v214
        %v251 = vunpack.c.l.b16 %v215
        %v252 = vunpack.c.h.b16 %v215
        %v253 = vunpack.c.l.b16 %v216
        %v254 = vunpack.c.h.b16 %v216
        %v255 = vunpack.c.l.b16 %v217
        %v256 = vunpack.c.h.b16 %v217
        %v257 = vunpack.c.l.b16 %v218
        %v258 = vunpack.c.h.b16 %v218
        %v259 = vunpack.c.l.b16 %v219
        %v260 = vunpack.c.h.b16 %v219
        %v261 = vunpack.c.l.b16 %v220
        %v262 = vunpack.c.h.b16 %v220
        %v263 = vunpack.c.l.b16 %v221
        %v264 = vunpack.c.h.b16 %v221
        %v265 = vunpack.c.l.b16 %v222
        %v266 = vunpack.c.h.b16 %v222
        %v267 = vpack.c.b16 %v251, %v249
        %v268 = vpack.c.b16 %v252, %v250
        %v269 = vpack.c.b16 %v255, %v253
        %v270 = vpack.c.b16 %v256, %v254
        %v271 = vpack.c.b16 %v259, %v257
        %v272 = vpack.c.b16 %v260, %v258
        %v273 = vpack.c.b16 %v263, %v261
        %v274 = vpack.c.b16 %v264, %v262
        %v275 = vpack.c.b16 %v265, %v265
        %v276 = vpack.c.b16 %v266, %v266
        %vm285 = vcmask 588800
        %v287 = vsel %vm285, %v239, 0
        %vm289 = vcmask 1043456
        %v291 = vsel %vm289, %v275, 0
        %v294 = vsel %vm289, %v276, 0
        %296 = vmatprep.subr.bf16.mxu0 0
        %297 = vmatpush1.bf16.msra.mxu0 0
        %298 = vmatprep.subr.bf16.mxu0 0
        %299 = vmatpush1.bf16.msra.mxu0 0
        %300 = vmatprep.subr.bf16.mxu0 0
        %301 = vmatpush1.bf16.msra.mxu0 0
        %302 = vmatprep.subr.bf16.mxu0 %v294
        %303 = vmatpush1.bf16.msra.mxu0 %v291
        %304 = vmatprep.subr.bf16.mxu0 %v274
        %305 = vmatpush1.bf16.msra.mxu0 %v273
        %306 = vmatprep.subr.bf16.mxu0 %v272
        %307 = vmatpush1.bf16.msra.mxu0 %v271
        %308 = vmatprep.subr.bf16.mxu0 %v270
        %309 = vmatpush1.bf16.msra.mxu0 %v269
        %310 = vmatprep.subr.bf16.mxu0 %v268
        %311 = vmatpush1.bf16.msra.mxu0 %v267
        %312 = vmatprep.subr.bf16.mxu0 0
        %313 = vmatpush2.bf16.msra.mxu0 0
        %314 = vmatprep.subr.bf16.mxu0 0
        %315 = vmatpush2.bf16.msra.mxu0 0
        %316 = vmatprep.subr.bf16.mxu0 0
        %317 = vmatpush2.bf16.msra.mxu0 0
        %318 = vmatprep.subr.bf16.mxu0 0
        %319 = vmatpush2.bf16.msra.mxu0 0
        %320 = vmatprep.subr.bf16.mxu0 0
        %321 = vmatpush2.bf16.msra.mxu0 0
        %322 = vmatprep.subr.bf16.mxu0 0
        %323 = vmatpush2.bf16.msra.mxu0 0
        %324 = vmatprep.subr.bf16.mxu0 0
        %325 = vmatpush2.bf16.msra.mxu0 0
        %326 = vmatprep.subr.bf16.mxu0 0
        %327 = vmatpush2.bf16.msra.mxu0 0
        %328 = vmatprep.mubr.bf16.mxu0 0
        %329 = vmatmul.mubr.bf16.gmra.mxu0 %v287
        %v330 = vpop.f32.mrf.mxu0
        %v331 = vadd.f32 %v228, %v330
        %v332 = vpop.f32.mrf.mxu0
        %v333 = vadd.f32 %v228, %v332
        %v334 = vpop.f32.mrf.mxu0
        %v335 = vadd.f32 %v233, %v334
        %v336 = vpop.f32.mrf.mxu0
        %v337 = vadd.f32 %v233, %v336
        %338 = vdwg.mxu0
        %v339 = vmax.f32 %v331, 0.0
        %v340 = vmax.f32 %v333, 0.0
        %v341 = vmax.f32 %v335, 0.0
        %v342 = vmax.f32 %v337, 0.0
        %v343 = vadd.f32 %v339, %v341
        %v344 = vadd.f32 %v340, %v342
        %v345 = vld [vmem:[%s2] sm:$0xff]
        %v346 = vld [vmem:[%s2 + $0x8] sm:$0xff]
        %v347 = vld [vmem:[%s2 + $0x10] sm:$0xff]
        %v348 = vld [vmem:[%s2 + $0x18] sm:$0xff]
        %vm349 = vcmask 64512
        %v351 = vsel %vm349, %v345, 0
        %v354 = vsel %vm349, %v346, 0
        %v357 = vsel %vm349, %v347, 0
        %v360 = vsel %vm349, %v348, 0
        %362 = vmatprep.subr.mxu0 0.0
        %363 = vmatpush1.msra.mxu0 0.0
        %364 = vmatprep.subr.mxu0 0.0
        %365 = vmatpush1.msra.mxu0 0.0
        %366 = vmatprep.subr.mxu0 0.0
        %367 = vmatpush1.msra.mxu0 0.0
        %368 = vmatprep.subr.mxu0 0.0
        %369 = vmatpush1.msra.mxu0 0.0
        %370 = vmatprep.subr.mxu0 0.0
        %371 = vmatpush1.msra.mxu0 0.0
        %372 = vmatprep.subr.mxu0 0.0
        %373 = vmatpush1.msra.mxu0 0.0
        %374 = vmatprep.subr.mxu0 0.0
        %375 = vmatpush1.msra.mxu0 0.0
        %376 = vmatprep.subr.mxu0 0.0
        %377 = vmatpush1.msra.mxu0 0.0
        %378 = vmatprep.subr.mxu0 0.0
        %379 = vmatpush1.msra.mxu0 0.0
        %380 = vmatprep.subr.mxu0 0.0
        %381 = vmatpush1.msra.mxu0 0.0
        %382 = vmatprep.subr.mxu0 0.0
        %383 = vmatpush1.msra.mxu0 0.0
        %384 = vmatprep.subr.mxu0 0.0
        %385 = vmatpush1.msra.mxu0 0.0
        %386 = vmatprep.subr.mxu0 0.0
        %387 = vmatpush1.msra.mxu0 0.0
        %388 = vmatprep.subr.mxu0 0.0
        %389 = vmatpush1.msra.mxu0 0.0
        %390 = vmatprep.subr.mxu0 0.0
        %391 = vmatpush1.msra.mxu0 0.0
        %392 = vmatprep.subr.mxu0 %v344
        %393 = vmatpush1.msra.mxu0 %v343
        %394 = vmatprep.subr.mxu0 0.0
        %395 = vmatpush2.msra.mxu0 0.0
        %396 = vmatprep.subr.mxu0 0.0
        %397 = vmatpush2.msra.mxu0 0.0
        %398 = vmatprep.subr.mxu0 0.0
        %399 = vmatpush2.msra.mxu0 0.0
        %400 = vmatprep.subr.mxu0 0.0
        %401 = vmatpush2.msra.mxu0 0.0
        %402 = vmatprep.subr.mxu0 0.0
        %403 = vmatpush2.msra.mxu0 0.0
        %404 = vmatprep.subr.mxu0 0.0
        %405 = vmatpush2.msra.mxu0 0.0
        %406 = vmatprep.subr.mxu0 0.0
        %407 = vmatpush2.msra.mxu0 0.0
        %408 = vmatprep.subr.mxu0 0.0
        %409 = vmatpush2.msra.mxu0 0.0
        %410 = vmatprep.subr.mxu0 0.0
        %411 = vmatpush2.msra.mxu0 0.0
        %412 = vmatprep.subr.mxu0 0.0
        %413 = vmatpush2.msra.mxu0 0.0
        %414 = vmatprep.subr.mxu0 0.0
        %415 = vmatpush2.msra.mxu0 0.0
        %416 = vmatprep.subr.mxu0 0.0
        %417 = vmatpush2.msra.mxu0 0.0
        %418 = vmatprep.subr.mxu0 0.0
        %419 = vmatpush2.msra.mxu0 0.0
        %420 = vmatprep.subr.mxu0 0.0
        %421 = vmatpush2.msra.mxu0 0.0
        %422 = vmatprep.subr.mxu0 0.0
        %423 = vmatpush2.msra.mxu0 0.0
        %424 = vmatprep.subr.mxu0 0.0
        %425 = vmatpush2.msra.mxu0 0.0
        %426 = vmatprep.mubr.f32.mxu0 0.0
        %427 = vmatmul.mubr.f32.gmra.mxu0 %v351
        %v428 = vpop.f32.mrf.mxu0
        %v429 = vadd.f32 0.0, %v428
        %v430 = vpop.f32.mrf.mxu0
        %v431 = vadd.f32 0.0, %v430
        %432 = vmatprep.mubr.f32.mxu0 0.0
        %433 = vmatmul.mubr.f32.gmra.mxu0 %v354
        %v434 = vpop.f32.mrf.mxu0
        %v435 = vadd.f32 0.0, %v434
        %v436 = vpop.f32.mrf.mxu0
        %v437 = vadd.f32 0.0, %v436
        %438 = vmatprep.mubr.f32.mxu0 0.0
        %439 = vmatmul.mubr.f32.gmra.mxu0 %v357
        %v440 = vpop.f32.mrf.mxu0
        %v441 = vadd.f32 0.0, %v440
        %v442 = vpop.f32.mrf.mxu0
        %v443 = vadd.f32 0.0, %v442
        %444 = vmatprep.mubr.f32.mxu0 0.0
        %445 = vmatmul.mubr.f32.gmra.mxu0 %v360
        %v446 = vpop.f32.mrf.mxu0
        %v447 = vadd.f32 0.0, %v446
        %v448 = vpop.f32.mrf.mxu0
        %v449 = vadd.f32 0.0, %v448
        %450 = vdwg.mxu0
        %v451 = vld [vmem:[%s3 + $0x10] sm:$0xff]
        %v452 = vld [vmem:[%s3 + $0x18] sm:$0xff]
        %v453 = vld [vmem:[%s3 + $0x20] sm:$0xff]
        %v454 = vld [vmem:[%s3 + $0x28] sm:$0xff]
        %v455 = vadd.f32 %v429, %v431
        %456 = vadd.xlane.f32.xlu0 %v455
        %v457 = vpop.xlane.xlu0 %456
        %v458 = vadd.f32 %v435, %v437
        %459 = vadd.xlane.f32.xlu0 %v458
        %v460 = vpop.xlane.xlu0 %459
        %v461 = vadd.f32 %v441, %v443
        %462 = vadd.xlane.f32.xlu0 %v461
        %v463 = vpop.xlane.xlu0 %462
        %v464 = vadd.f32 %v447, %v449
        %465 = vadd.xlane.f32.xlu0 %v464
        %v466 = vpop.xlane.xlu0 %465
        %v467 = vmul.f32 %v457, 0.00390625
        %v468 = vmul.f32 %v460, 0.00390625
        %v469 = vmul.f32 %v463, 0.00390625
        %v470 = vmul.f32 %v466, 0.00390625
        %v471 = vadd.f32 %v467, %v451
        %v472 = vadd.f32 %v468, %v452
        %v473 = vadd.f32 %v469, %v453
        %v474 = vadd.f32 %v470, %v454
        %v475 = vmax.f32 %v471, 0.0
        %v476 = vmax.f32 %v472, 0.0
        %v477 = vmax.f32 %v473, 0.0
        %v478 = vmax.f32 %v474, 0.0
        %v479 = vld [vmem:[%s2 + $0x20] sm:$0xff]
        %v480 = vld [vmem:[%s2 + $0x28] sm:$0xff]
        %v481 = vld [vmem:[%s3 + $0x30] sm:$0xff]
        %v482 = vld [vmem:[%s3 + $0x38] sm:$0xff]
        %484 = vset.pattern.permute.xlu0 0
        %485 = vperm.xlu0 %484, %v475
        %v486 = vpop.permute.xlu0 %485
        %489 = vset.pattern.permute.xlu0 0
        %490 = vperm.xlu0 %489, %v476
        %v491 = vpop.permute.xlu0 %490
        %494 = vset.pattern.permute.xlu0 0
        %495 = vperm.xlu0 %494, %v477
        %v496 = vpop.permute.xlu0 %495
        %499 = vset.pattern.permute.xlu0 0
        %500 = vperm.xlu0 %499, %v478
        %v501 = vpop.permute.xlu0 %500
        %504 = vset.pattern.permute.xlu0 0
        %505 = vperm.xlu0 %504, %v481
        %v506 = vpop.permute.xlu0 %505
        %509 = vset.pattern.permute.xlu0 0
        %510 = vperm.xlu0 %509, %v482
        %v511 = vpop.permute.xlu0 %510
        %vm513 = vcmask 261120
        %v515 = vsel %vm513, %v479, 0
        %v518 = vsel %vm513, %v480, 0
        %520 = vmatprep.subr.mxu0 0.0
        %521 = vmatpush1.msra.mxu0 0.0
        %522 = vmatprep.subr.mxu0 0.0
        %523 = vmatpush1.msra.mxu0 0.0
        %524 = vmatprep.subr.mxu0 0.0
        %525 = vmatpush1.msra.mxu0 0.0
        %526 = vmatprep.subr.mxu0 0.0
        %527 = vmatpush1.msra.mxu0 0.0
        %528 = vmatprep.subr.mxu0 0.0
        %529 = vmatpush1.msra.mxu0 0.0
        %530 = vmatprep.subr.mxu0 0.0
        %531 = vmatpush1.msra.mxu0 0.0
        %532 = vmatprep.subr.mxu0 0.0
        %533 = vmatpush1.msra.mxu0 0.0
        %534 = vmatprep.subr.mxu0 0.0
        %535 = vmatpush1.msra.mxu0 0.0
        %536 = vmatprep.subr.mxu0 0.0
        %537 = vmatpush1.msra.mxu0 0.0
        %538 = vmatprep.subr.mxu0 0.0
        %539 = vmatpush1.msra.mxu0 0.0
        %540 = vmatprep.subr.mxu0 0.0
        %541 = vmatpush1.msra.mxu0 0.0
        %542 = vmatprep.subr.mxu0 0.0
        %543 = vmatpush1.msra.mxu0 0.0
        %544 = vmatprep.subr.mxu0 %v501
        %545 = vmatpush1.msra.mxu0 %v501
        %546 = vmatprep.subr.mxu0 %v496
        %547 = vmatpush1.msra.mxu0 %v496
        %548 = vmatprep.subr.mxu0 %v491
        %549 = vmatpush1.msra.mxu0 %v491
        %550 = vmatprep.subr.mxu0 %v486
        %551 = vmatpush1.msra.mxu0 %v486
        %552 = vmatprep.subr.mxu0 0.0
        %553 = vmatpush2.msra.mxu0 0.0
        %554 = vmatprep.subr.mxu0 0.0
        %555 = vmatpush2.msra.mxu0 0.0
        %556 = vmatprep.subr.mxu0 0.0
        %557 = vmatpush2.msra.mxu0 0.0
        %558 = vmatprep.subr.mxu0 0.0
        %559 = vmatpush2.msra.mxu0 0.0
        %560 = vmatprep.subr.mxu0 0.0
        %561 = vmatpush2.msra.mxu0 0.0
        %562 = vmatprep.subr.mxu0 0.0
        %563 = vmatpush2.msra.mxu0 0.0
        %564 = vmatprep.subr.mxu0 0.0
        %565 = vmatpush2.msra.mxu0 0.0
        %566 = vmatprep.subr.mxu0 0.0
        %567 = vmatpush2.msra.mxu0 0.0
        %568 = vmatprep.subr.mxu0 0.0
        %569 = vmatpush2.msra.mxu0 0.0
        %570 = vmatprep.subr.mxu0 0.0
        %571 = vmatpush2.msra.mxu0 0.0
        %572 = vmatprep.subr.mxu0 0.0
        %573 = vmatpush2.msra.mxu0 0.0
        %574 = vmatprep.subr.mxu0 0.0
        %575 = vmatpush2.msra.mxu0 0.0
        %576 = vmatprep.subr.mxu0 0.0
        %577 = vmatpush2.msra.mxu0 0.0
        %578 = vmatprep.subr.mxu0 0.0
        %579 = vmatpush2.msra.mxu0 0.0
        %580 = vmatprep.subr.mxu0 0.0
        %581 = vmatpush2.msra.mxu0 0.0
        %582 = vmatprep.subr.mxu0 0.0
        %583 = vmatpush2.msra.mxu0 0.0
        %584 = vmatprep.mubr.f32.mxu0 0.0
        %585 = vmatmul.mubr.f32.gmra.mxu0 %v515
        %v586 = vpop.f32.mrf.mxu0
        %v587 = vadd.f32 %v506, %v586
        %v588 = vpop.f32.mrf.mxu0
        %v589 = vadd.f32 %v506, %v588
        %590 = vmatprep.mubr.f32.mxu0 0.0
        %591 = vmatmul.mubr.f32.gmra.mxu0 %v518
        %v592 = vpop.f32.mrf.mxu0
        %v593 = vadd.f32 %v511, %v592
        %v594 = vpop.f32.mrf.mxu0
        %v595 = vadd.f32 %v511, %v594
        %596 = vdwg.mxu0
        %v597 = vmax.f32 %v587, %v593
        %v598 = vmax.f32 %v589, %v595
        %v599 = vsub.f32 %v587, %v597
        %v600 = vsub.f32 %v589, %v598
        %v601 = vmul.f32 %v599, 1.442695
        %v602 = vpow.pop %v601
        %v603 = vmul.f32 %v600, 1.442695
        %v604 = vpow.pop %v603
        %v605 = vsub.f32 %v593, %v597
        %v606 = vsub.f32 %v595, %v598
        %v607 = vmul.f32 %v605, 1.442695
        %v608 = vpow.pop %v607
        %v609 = vmul.f32 %v606, 1.442695
        %v610 = vpow.pop %v609
        %v611 = vadd.f32 %v602, %v608
        %v612 = vadd.f32 %v604, %v610
        %v613 = vrcp.pop %v611
        %v614 = vrcp.pop %v612
        %v615 = vmul.f32 %v602, %v613
        %v616 = vmul.f32 %v604, %v614
        %v617 = vmul.f32 %v615, %v339
        %v618 = vmul.f32 %v616, %v340
        %v619 = vmul.f32 %v608, %v613
        %v620 = vmul.f32 %v610, %v614
        %v621 = vmul.f32 %v619, %v341
        %v622 = vmul.f32 %v620, %v342
        %v623 = vadd.f32 %v617, %v621
        %v624 = vadd.f32 %v618, %v622
        %625 = vst [vmem:[%s205] sm:$0xff] %v623
        %626 = vst [vmem:[%s205 + $0x8] sm:$0xff] %v624
        %s627 = sand.u32 %s116, 1
        %s628 = scalar_lea.sflag [#allocation4], %s627
        %s629 = sand.u32 %s116, 1
        %s630 = smul.addr %s629, 16
        %s631 = scalar_lea.vmem [#allocation5], %s630
        // Predicated region
        $region41: #{tpu_custom_call.1} parent=35 // pred_check
          %p632 = pneg %p126
        $region42: #{tpu_custom_call.1} parent=35 // pred_check_branch
          %634 = sbr.rel (%p632) target = $region44
        $region43: #{tpu_custom_call.1} parent=35 // pred_region
          %s636 = ssub.s32 256, 256
          %637 = vsyncadd %s628, %s636
          %s638 = smul.addr %s19, 2
          %s639 = smul.addr %s638, 128
          %s640 = scalar_lea.hbm %s4, %s639
          %s642 = sshll.u32 %s631, 4
          %s643 = int_to_ptr.vmem [resolvable:$true] %s642
          %645 = dma.vmem_to_hbm [thread:$0]  %s643, 256, %s640, %s628
        $region44: #{tpu_custom_call.1} parent=35 // pred_fallthru
          _
      $region36: #{tpu_custom_call.1} parent=5 // pred_fallthru
        _
      %p646 = scmp.le.s32.totalorder 2, %s14
      // Predicated region
      $region45: #{tpu_custom_call.1} parent=5 // pred_check
        %p647 = pneg %p646
      $region46: #{tpu_custom_call.1} parent=5 // pred_check_branch
        %649 = sbr.rel (%p647) target = $region48
      $region47: #{tpu_custom_call.1} parent=5 // pred_region
        %s650 = ssub.s32 %s14, 2
        // Predicated region
        $region49: #{tpu_custom_call.1} parent=47 // pred_check
          %p651 = pneg %p132
        $region50: #{tpu_custom_call.1} parent=47 // pred_check_branch
          %653 = sbr.rel (%p651) target = $region52
        $region51: #{tpu_custom_call.1} parent=47 // pred_region
          %s654 = sand.u32 %s117, 1
          %s655 = scalar_lea.sflag [#allocation4], %s654
          %s656 = sand.u32 %s117, 1
          %s657 = smul.addr %s656, 16
          %s658 = scalar_lea.vmem [#allocation5], %s657
          %659 = dma.done %s655, 256
        $region52: #{tpu_custom_call.1} parent=47 // pred_fallthru
          _
      $region48: #{tpu_custom_call.1} parent=5 // pred_fallthru
        _
    $region6: #{tpu_custom_call.1} parent=1 // loop_footer
      %s18 = sadd.s32 1, %s14
    $region7: #{tpu_custom_call.1} parent=1 // loop_footer_branch
      %13 = sbr.rel target = $region3
    $region8: #{tpu_custom_call.1} parent=1 // loop_exit
      _
    %660 = vsyncpa [#allocation3], 1
    %s661 = scalar_lea.sflag [#allocation3], 1
    %662 = vsyncpa %s661, 1
    %663 = vsyncpa [#allocation4], 1
    %s664 = scalar_lea.sflag [#allocation4], 1
    %665 = vsyncpa %s664, 1

</llo_original>
